<compile_context>
chip_gen: v7x
topology: tpu7x:2x2x1
jax: 0.10.0
libtpu: 0.0.40
codegen_flags: <defaults>
</compile_context>

<pallas_src>
import math

import jax
import jax.numpy as jnp
import numpy as np
from jax.experimental import pallas as pl
from jax.experimental.pallas import tpu as pltpu

LANE = 128      # lane-dense output width
TILE_B = 256    # max batch rows per grid step (multiple of 128)


# ---------------------------------------------------------------------------
# Pallas kernel: whole forward for one batch tile.
# ---------------------------------------------------------------------------
def dueling_kernel(x_ref, w_in_ref, w64_ref, b64_ref, wq_ref, bq_ref, q_ref):
    w_in = w_in_ref[...]        # (IN_pad, 64)  bf16
    w64 = w64_ref[...]          # (3, 64, 64)   bf16: [fc1, fc2, folded out_layer@head_hidden]
    b64 = b64_ref[...]          # (4, 1, 64)    f32 : [b_in, b_fc1, b_fc2, b_folded]
    wq = wq_ref[...]            # (64, 128)     bf16: folded value+advantage second layer
    bq = bq_ref[...]            # (1, 128)      f32 : already has the row-0 adv mean folded in

    def mm(h, w):
        # Cast activations to the (bf16) weight dtype only at the MXU boundary;
        # bias add / ReLU stay f32 on the VPU (v5e has no bf16 VPU path).
        return jnp.dot(h.astype(w.dtype), w, preferred_element_type=jnp.float32)

    # backbone: relu(input) -> relu(fc1) -> relu(fc2), then the folded
    # (output_layer @ head_hidden) layer with ReLU, then the folded head-2 layer.
    h = jnp.maximum(mm(x_ref[...], w_in) + b64[0], 0.0)
    h = jnp.maximum(mm(h, w64[0]) + b64[1], 0.0)
    h = jnp.maximum(mm(h, w64[1]) + b64[2], 0.0)
    h = jnp.maximum(mm(h, w64[2]) + b64[3], 0.0)
    # cols [0, A): value + advantage + (bias - row0_adv_mean)  == final q-values
    q_ref[...] = mm(h, wq) + bq                      # lane-dense (tile_b, 128) store


# ---------------------------------------------------------------------------
# Wrapper helpers
# ---------------------------------------------------------------------------
def _choose_tile(batch, tile_b):
    """Pick a batch tile (multiple of 128) and padded batch; keep >=2 tiles on v7x."""
    b128 = max(128, ((batch + 127) // 128) * 128)
    tile = min(tile_b, b128)
    if b128 >= 256:                                   # enough rows for both v7x TCs
        half = ((b128 // 2 + 127) // 128) * 128
        tile = min(tile, half)
    tile = max(128, (tile // 128) * 128)
    b_pad = ((batch + tile - 1) // tile) * tile
    return tile, b_pad


def _row0_adv_mean(x0_padded, packed):
    """Tiny 1-row f32 forward for the PyTorch `advantage.mean(dim=1, keepdim=True)[0]`
    quirk: returns the mean of batch-element 0's advantage (a scalar)."""
    w_in = packed["w_in"].astype(jnp.float32)
    w64 = packed["w64"].astype(jnp.float32)
    b64 = packed["b64"]
    wq = packed["wq"].astype(jnp.float32)
    bq0 = packed["bq"]
    h = jax.nn.relu(x0_padded @ w_in + b64[0])
    h = jax.nn.relu(h @ w64[0] + b64[1])
    h = jax.nn.relu(h @ w64[1] + b64[2])
    h = jax.nn.relu(h @ w64[2] + b64[3])
    out0 = h @ wq + bq0                               # (1, 128)
    return out0[0, packed["a_col"]]                   # col A = per-row advantage mean


def dueling_forward(x, packed, n_actions, *, tile_b=TILE_B):
    B, in_size = x.shape
    in_pad = packed["w_in"].shape[0]
    tile, b_pad = _choose_tile(B, tile_b)
    grid = (b_pad // tile,)

    x_f32 = x.astype(jnp.float32)
    # bf16 input, zero-padded on both batch and feature dims (zeros contribute nothing).
    x_pad = jnp.zeros((b_pad, in_pad), jnp.bfloat16).at[:B, :in_size].set(
        x_f32.astype(jnp.bfloat16))

    # Row-0 advantage mean computed once (wrapper-side, f32) and folded into the bias.
    x0 = jnp.zeros((1, in_pad), jnp.float32).at[0, :in_size].set(x_f32[0])
    mean_row0 = _row0_adv_mean(x0, packed)
    bq_call = packed["bq"] - mean_row0                # (1, 128) f32

    out = pl.pallas_call(
        dueling_kernel,
        out_shape=jax.ShapeDtypeStruct((b_pad, LANE), jnp.float32),
        grid=grid,
        in_specs=[
            pl.BlockSpec((tile, in_pad), lambda i: (i, 0)),             # x tile
            pl.BlockSpec(packed["w_in"].shape, lambda i: (0, 0)),       # (IN_pad, 64)
            pl.BlockSpec(packed["w64"].shape, lambda i: (0, 0, 0)),     # (3, 64, 64)
            pl.BlockSpec(packed["b64"].shape, lambda i: (0, 0, 0)),     # (4, 1, 64)
            pl.BlockSpec(packed["wq"].shape, lambda i: (0, 0)),         # (64, 128)
            pl.BlockSpec(packed["bq"].shape, lambda i: (0, 0)),         # (1, 128)
        ],
        out_specs=pl.BlockSpec((tile, LANE), lambda i: (i, 0)),
        compiler_params=pltpu.CompilerParams(
            dimension_semantics=("parallel",)),
    )(x_pad, packed["w_in"], packed["w64"], packed["b64"], packed["wq"], bq_call)
    return out[:B, :n_actions]


# ---------------------------------------------------------------------------
# Parameter init (PyTorch nn.Linear-style uniform bounds), stored as (in, out).
# ---------------------------------------------------------------------------
def init_linear(key, fan_in, fan_out):
    kw, kb = jax.random.split(key)
    bound = 1.0 / math.sqrt(fan_in)
    w = jax.random.uniform(kw, (fan_in, fan_out), jnp.float32, -bound, bound)
    b = jax.random.uniform(kb, (1, fan_out), jnp.float32, -bound, bound)
    return w, b


def init_params(key, input_size, output_size, hidden=(64, 64, 64)):
    latent = hidden[-1]
    half = latent // 2
    keys = jax.random.split(key, 8)
    p = {}
    # backbone: Linear(in,64), Linear(64,64), Linear(64,64), Linear(64,64)
    p["w0"], p["b0"] = init_linear(keys[0], input_size, hidden[0])
    p["w1"], p["b1"] = init_linear(keys[1], hidden[0], hidden[1])
    p["w2"], p["b2"] = init_linear(keys[2], hidden[1], hidden[2])
    p["w3"], p["b3"] = init_linear(keys[3], hidden[2], latent)
    # value head: Linear(64,32), Linear(32,1)
    p["wv0"], p["bv0"] = init_linear(keys[4], latent, half)
    p["wv1"], p["bv1"] = init_linear(keys[5], half, 1)
    # advantage head: Linear(64,32), Linear(32,A)
    p["wa0"], p["ba0"] = init_linear(keys[6], latent, half)
    p["wa1"], p["ba1"] = init_linear(keys[7], half, output_size)
    return p


def pack_params(p, n_actions, weight_dtype=jnp.bfloat16, in_pad_to=64):
    """Pack the 16 nn.Linear tensors into 5 kernel slabs (weights bf16, biases f32)."""
    A = n_actions
    assert A + 1 <= LANE, "output_size must be < 128 for the lane-dense layout"
    half = p["wv0"].shape[1]
    in_size = p["w0"].shape[0]

    # Zero-pad input features to a lane-friendly size (padded x columns are zero too).
    in_pad = ((in_size + in_pad_to - 1) // in_pad_to) * in_pad_to
    w_in = jnp.zeros((in_pad, p["w0"].shape[1]), jnp.float32).at[:in_size].set(p["w0"])
    w_in = w_in.astype(weight_dtype)

    # Fused [value_hidden | advantage_hidden] layer.
    w_h1 = jnp.concatenate([p["wv0"], p["wa0"]], axis=1)            # (64, 64) f32
    b_h1 = jnp.concatenate([p["bv0"], p["ba0"]], axis=1)            # (1, 64)  f32
    # Fold the (no-ReLU) backbone output_layer into it, in f32, then cast to bf16.
    w34 = p["w3"] @ w_h1                                            # (64, 64) f32
    b34 = p["b3"] @ w_h1 + b_h1                                     # (1, 64)  f32

    w64 = jnp.stack([p["w1"], p["w2"], w34]).astype(weight_dtype)   # (3, 64, 64)
    b64 = jnp.stack([p["b0"], p["b1"], p["b2"], b34])               # (4, 1, 64) f32

    # Folded head-2 weight, lane-padded to 128 cols:
    #   rows [0,32)  = value hidden -> value weight broadcast over the A q columns
    #   rows [32,64) = adv hidden   -> advantage weights; col A = column-mean of wa1
    wq = jnp.zeros((2 * half, LANE), jnp.float32)
    wq = wq.at[:half, :A].set(jnp.broadcast_to(p["wv1"], (half, A)))
    wq = wq.at[half:, :A].set(p["wa1"])
    wq = wq.at[half:, A].set(jnp.mean(p["wa1"], axis=1))
    bq = jnp.zeros((1, LANE), jnp.float32)
    bq = bq.at[0, :A].set(p["bv1"][0, 0] + p["ba1"][0])
    bq = bq.at[0, A].set(jnp.mean(p["ba1"]))

    return {"w_in": w_in, "w64": w64, "b64": b64,
            "wq": wq.astype(weight_dtype), "bq": bq, "a_col": A}


# Plain-JAX f32 reference (mirrors the PyTorch forward exactly) for validation.
def reference_forward(x, p):
    def lin(h, w, b):
        return h @ w + b

    h = jax.nn.relu(lin(x, p["w0"], p["b0"]))
    h = jax.nn.relu(lin(h, p["w1"], p["b1"]))
    h = jax.nn.relu(lin(h, p["w2"], p["b2"]))
    latent = lin(h, p["w3"], p["b3"])
    value = lin(jax.nn.relu(lin(latent, p["wv0"], p["bv0"])), p["wv1"], p["bv1"])
    adv = lin(jax.nn.relu(lin(latent, p["wa0"], p["ba0"])), p["wa1"], p["ba1"])
    mean_row0 = jnp.mean(adv, axis=1, keepdims=True)[0]   # (1,) — PyTorch row-0 quirk
    return value + (adv - mean_row0)


if __name__ == "__main__":
    INPUT_SIZE, OUTPUT_SIZE = 37, 4   # banana-collector: 37-dim state, 4 actions

    key = jax.random.PRNGKey(0)
    k_params, k_x = jax.random.split(key)
    params = init_params(k_params, INPUT_SIZE, OUTPUT_SIZE)
    packed = pack_params(params, OUTPUT_SIZE)

    # Batched call: two 128-row tiles -> exercises the parallel grid (both v7x cores).
    x = jax.random.normal(k_x, (256, INPUT_SIZE), jnp.float32)
    q = jax.block_until_ready(dueling_forward(x, packed, OUTPUT_SIZE))
    q_ref = reference_forward(x, params)
    np.testing.assert_allclose(np.asarray(q), np.asarray(q_ref), rtol=5e-2, atol=5e-2)
    assert q.shape == (256, OUTPUT_SIZE)

    # Small, non-multiple batch -> exercises the padding path (single tile).
    x_small = x[:5]
    q_small = jax.block_until_ready(dueling_forward(x_small, packed, OUTPUT_SIZE))
    np.testing.assert_allclose(np.asarray(q_small),
                               np.asarray(reference_forward(x_small, params)),
                               rtol=5e-2, atol=5e-2)
    assert q_small.shape == (5, OUTPUT_SIZE)

    print("KERNEL_OK")
</pallas_src>

<mosaic_0001>
module attributes {stable_mosaic.version = 11 : i64} {
  func.func @dueling_kernel(%arg0: i32, %arg1: memref<128x64xbf16, #tpu.memory_space<vmem>>, %arg2: memref<64x64xbf16, #tpu.memory_space<vmem>>, %arg3: memref<3x64x64xbf16, #tpu.memory_space<vmem>>, %arg4: memref<4x1x64xf32, #tpu.memory_space<vmem>>, %arg5: memref<64x128xbf16, #tpu.memory_space<vmem>>, %arg6: memref<1x128xf32, #tpu.memory_space<vmem>>, %arg7: memref<128x128xf32, #tpu.memory_space<vmem>>) attributes {dimension_semantics = [#tpu.dimension_semantics<parallel>], iteration_bounds = array<i64: 2>, scalar_prefetch = 0 : i64, scratch_operands = 0 : i64, tpu.core_type = #tpu.core_type<tc>, window_params = [{transform_indices = @transform_0, window_bounds = array<i64: 128, 64>}, {pipeline_mode = #tpu.pipeline_mode<synchronous>, transform_indices = @transform_1, window_bounds = array<i64: 64, 64>}, {pipeline_mode = #tpu.pipeline_mode<synchronous>, transform_indices = @transform_2, window_bounds = array<i64: 3, 64, 64>}, {pipeline_mode = #tpu.pipeline_mode<synchronous>, transform_indices = @transform_3, window_bounds = array<i64: 4, 1, 64>}, {pipeline_mode = #tpu.pipeline_mode<synchronous>, transform_indices = @transform_4, window_bounds = array<i64: 64, 128>}, {pipeline_mode = #tpu.pipeline_mode<synchronous>, transform_indices = @transform_5, window_bounds = array<i64: 1, 128>}, {transform_indices = @transform_6, window_bounds = array<i64: 128, 128>}]} {
    %c0 = arith.constant 0 : index
    %c0_0 = arith.constant 0 : index
    %0 = vector.load %arg2[%c0, %c0_0] : memref<64x64xbf16, #tpu.memory_space<vmem>>, vector<64x64xbf16>
    %c0_1 = arith.constant 0 : index
    %c0_2 = arith.constant 0 : index
    %c0_3 = arith.constant 0 : index
    %1 = vector.load %arg3[%c0_1, %c0_2, %c0_3] : memref<3x64x64xbf16, #tpu.memory_space<vmem>>, vector<3x64x64xbf16>
    %c0_4 = arith.constant 0 : index
    %c0_5 = arith.constant 0 : index
    %c0_6 = arith.constant 0 : index
    %2 = vector.load %arg4[%c0_4, %c0_5, %c0_6] : memref<4x1x64xf32, #tpu.memory_space<vmem>>, vector<4x1x64xf32>
    %c0_7 = arith.constant 0 : index
    %c0_8 = arith.constant 0 : index
    %3 = vector.load %arg5[%c0_7, %c0_8] : memref<64x128xbf16, #tpu.memory_space<vmem>>, vector<64x128xbf16>
    %c0_9 = arith.constant 0 : index
    %c0_10 = arith.constant 0 : index
    %4 = vector.load %arg6[%c0_9, %c0_10] : memref<1x128xf32, #tpu.memory_space<vmem>>, vector<1x128xf32>
    %c0_11 = arith.constant 0 : index
    %c0_12 = arith.constant 0 : index
    %5 = vector.load %arg1[%c0_11, %c0_12] : memref<128x64xbf16, #tpu.memory_space<vmem>>, vector<128x64xbf16>
    %cst = arith.constant dense<0.000000e+00> : vector<128x64xf32>
    %6 = tpu.matmul %5, %0, %cst {dimension_numbers = #tpu.dot_dimension_numbers<[1], [0], [0], [1], [0, 0, 1, 1], [], []>} : vector<128x64xbf16>, vector<64x64xbf16>, vector<128x64xf32> -> vector<128x64xf32>
    %7 = vector.extract_strided_slice %2 {offsets = [0, 0, 0], sizes = [1, 1, 64], strides = [1, 1, 1]} : vector<4x1x64xf32> to vector<1x1x64xf32>
    %8 = vector.shape_cast %7 : vector<1x1x64xf32> to vector<1x64xf32>
    %9 = vector.broadcast %8 : vector<1x64xf32> to vector<128x64xf32>
    %10 = arith.addf %6, %9 : vector<128x64xf32>
    %cst_13 = arith.constant 0.000000e+00 : f32
    %11 = vector.broadcast %cst_13 : f32 to vector<128x64xf32>
    %12 = arith.maximumf %10, %11 : vector<128x64xf32>
    %13 = vector.extract_strided_slice %1 {offsets = [0, 0, 0], sizes = [1, 64, 64], strides = [1, 1, 1]} : vector<3x64x64xbf16> to vector<1x64x64xbf16>
    %14 = vector.shape_cast %13 : vector<1x64x64xbf16> to vector<64x64xbf16>
    %15 = arith.truncf %12 : vector<128x64xf32> to vector<128x64xbf16>
    %cst_14 = arith.constant dense<0.000000e+00> : vector<128x64xf32>
    %16 = tpu.matmul %15, %14, %cst_14 {dimension_numbers = #tpu.dot_dimension_numbers<[1], [0], [0], [1], [0, 0, 1, 1], [], []>} : vector<128x64xbf16>, vector<64x64xbf16>, vector<128x64xf32> -> vector<128x64xf32>
    %17 = vector.extract_strided_slice %2 {offsets = [1, 0, 0], sizes = [1, 1, 64], strides = [1, 1, 1]} : vector<4x1x64xf32> to vector<1x1x64xf32>
    %18 = vector.shape_cast %17 : vector<1x1x64xf32> to vector<1x64xf32>
    %19 = vector.broadcast %18 : vector<1x64xf32> to vector<128x64xf32>
    %20 = arith.addf %16, %19 : vector<128x64xf32>
    %cst_15 = arith.constant 0.000000e+00 : f32
    %21 = vector.broadcast %cst_15 : f32 to vector<128x64xf32>
    %22 = arith.maximumf %20, %21 : vector<128x64xf32>
    %23 = vector.extract_strided_slice %1 {offsets = [1, 0, 0], sizes = [1, 64, 64], strides = [1, 1, 1]} : vector<3x64x64xbf16> to vector<1x64x64xbf16>
    %24 = vector.shape_cast %23 : vector<1x64x64xbf16> to vector<64x64xbf16>
    %25 = arith.truncf %22 : vector<128x64xf32> to vector<128x64xbf16>
    %cst_16 = arith.constant dense<0.000000e+00> : vector<128x64xf32>
    %26 = tpu.matmul %25, %24, %cst_16 {dimension_numbers = #tpu.dot_dimension_numbers<[1], [0], [0], [1], [0, 0, 1, 1], [], []>} : vector<128x64xbf16>, vector<64x64xbf16>, vector<128x64xf32> -> vector<128x64xf32>
    %27 = vector.extract_strided_slice %2 {offsets = [2, 0, 0], sizes = [1, 1, 64], strides = [1, 1, 1]} : vector<4x1x64xf32> to vector<1x1x64xf32>
    %28 = vector.shape_cast %27 : vector<1x1x64xf32> to vector<1x64xf32>
    %29 = vector.broadcast %28 : vector<1x64xf32> to vector<128x64xf32>
    %30 = arith.addf %26, %29 : vector<128x64xf32>
    %cst_17 = arith.constant 0.000000e+00 : f32
    %31 = vector.broadcast %cst_17 : f32 to vector<128x64xf32>
    %32 = arith.maximumf %30, %31 : vector<128x64xf32>
    %33 = vector.extract_strided_slice %1 {offsets = [2, 0, 0], sizes = [1, 64, 64], strides = [1, 1, 1]} : vector<3x64x64xbf16> to vector<1x64x64xbf16>
    %34 = vector.shape_cast %33 : vector<1x64x64xbf16> to vector<64x64xbf16>
    %35 = arith.truncf %32 : vector<128x64xf32> to vector<128x64xbf16>
    %cst_18 = arith.constant dense<0.000000e+00> : vector<128x64xf32>
    %36 = tpu.matmul %35, %34, %cst_18 {dimension_numbers = #tpu.dot_dimension_numbers<[1], [0], [0], [1], [0, 0, 1, 1], [], []>} : vector<128x64xbf16>, vector<64x64xbf16>, vector<128x64xf32> -> vector<128x64xf32>
    %37 = vector.extract_strided_slice %2 {offsets = [3, 0, 0], sizes = [1, 1, 64], strides = [1, 1, 1]} : vector<4x1x64xf32> to vector<1x1x64xf32>
    %38 = vector.shape_cast %37 : vector<1x1x64xf32> to vector<1x64xf32>
    %39 = vector.broadcast %38 : vector<1x64xf32> to vector<128x64xf32>
    %40 = arith.addf %36, %39 : vector<128x64xf32>
    %cst_19 = arith.constant 0.000000e+00 : f32
    %41 = vector.broadcast %cst_19 : f32 to vector<128x64xf32>
    %42 = arith.maximumf %40, %41 : vector<128x64xf32>
    %43 = arith.truncf %42 : vector<128x64xf32> to vector<128x64xbf16>
    %cst_20 = arith.constant dense<0.000000e+00> : vector<128x128xf32>
    %44 = tpu.matmul %43, %3, %cst_20 {dimension_numbers = #tpu.dot_dimension_numbers<[1], [0], [0], [1], [0, 0, 1, 1], [], []>} : vector<128x64xbf16>, vector<64x128xbf16>, vector<128x128xf32> -> vector<128x128xf32>
    %45 = vector.broadcast %4 : vector<1x128xf32> to vector<128x128xf32>
    %46 = arith.addf %44, %45 : vector<128x128xf32>
    %c0_21 = arith.constant 0 : index
    %c0_22 = arith.constant 0 : index
    %47 = vector.load %arg7[%c0_21, %c0_22] : memref<128x128xf32, #tpu.memory_space<vmem>>, vector<128x128xf32>
    tpu.vector_store %arg7[%c0_21, %c0_22], %46 {strides = array<i32>} : memref<128x128xf32, #tpu.memory_space<vmem>>, vector<128x128xf32>,
    return
  }
  func.func @transform_0(%arg0: i32) -> (i32, i32) {
    %c0_i32 = arith.constant 0 : i32
    %c0_i32_0 = arith.constant 0 : i32
    return %arg0, %c0_i32 : i32, i32
  }
  func.func @transform_1(%arg0: i32) -> (i32, i32) {
    %c0_i32 = arith.constant 0 : i32
    %c0_i32_0 = arith.constant 0 : i32
    %c0_i32_1 = arith.constant 0 : i32
    return %c0_i32, %c0_i32_0 : i32, i32
  }
  func.func @transform_2(%arg0: i32) -> (i32, i32, i32) {
    %c0_i32 = arith.constant 0 : i32
    %c0_i32_0 = arith.constant 0 : i32
    %c0_i32_1 = arith.constant 0 : i32
    %c0_i32_2 = arith.constant 0 : i32
    return %c0_i32, %c0_i32_0, %c0_i32_1 : i32, i32, i32
  }
  func.func @transform_3(%arg0: i32) -> (i32, i32, i32) {
    %c0_i32 = arith.constant 0 : i32
    %c0_i32_0 = arith.constant 0 : i32
    %c0_i32_1 = arith.constant 0 : i32
    %c0_i32_2 = arith.constant 0 : i32
    return %c0_i32, %c0_i32_0, %c0_i32_1 : i32, i32, i32
  }
  func.func @transform_4(%arg0: i32) -> (i32, i32) {
    %c0_i32 = arith.constant 0 : i32
    %c0_i32_0 = arith.constant 0 : i32
    %c0_i32_1 = arith.constant 0 : i32
    return %c0_i32, %c0_i32_0 : i32, i32
  }
  func.func @transform_5(%arg0: i32) -> (i32, i32) {
    %c0_i32 = arith.constant 0 : i32
    %c0_i32_0 = arith.constant 0 : i32
    %c0_i32_1 = arith.constant 0 : i32
    return %c0_i32, %c0_i32_0 : i32, i32
  }
  func.func @transform_6(%arg0: i32) -> (i32, i32) {
    %c0_i32 = arith.constant 0 : i32
    %c0_i32_0 = arith.constant 0 : i32
    return %arg0, %c0_i32 : i32, i32
  }
}

</mosaic_0001>

<llo_original>
// kernel: tpu_custom_call.1
$region0: #{tpu_custom_call.1}
  #allocation0 [shape = 'u32[]', space=smem, size = 0x4, offset = 0x4, fixed_abs, tag = 'smem constant byte address 0x4 - core index']
  #allocation1 [shape = 'u32[144,128]{1,0:T(1,128)}', space=vmem, size = 0x12000, scoped, tag = 'internal scratch']
  %s0 = inlined_call_operand.vmem [shape: bf16[256,64], index: 0, kind: input, shape index: {}]
  %s1 = inlined_call_operand.vmem [shape: bf16[64,64], index: 1, kind: input, shape index: {}]
  %s2 = inlined_call_operand.vmem [shape: bf16[3,64,64], index: 2, kind: input, shape index: {}]
  %s3 = inlined_call_operand.vmem [shape: f32[4,1,64], index: 3, kind: input, shape index: {}]
  %s4 = inlined_call_operand.vmem [shape: bf16[64,128], index: 4, kind: input, shape index: {}]
  %s5 = inlined_call_operand.vmem [shape: f32[1,128], index: 5, kind: input, shape index: {}]
  %s6 = inlined_call_operand.hbm [shape: f32[256,128], index: 6, kind: output, shape index: {}]
  %s7 = sld [smem:[#allocation0]]
  $region57: #{tpu_custom_call.1} parent=0
    _
  %s9 = ssub.s32 1, %s7
  %s10 = scalar_select 0, %s9, %s7
  $region1: #{tpu_custom_call.1} parent=0
    #allocation2 [shape = 'u8[131072]{0}', space=vmem, size = 0x20000, scoped, tag = 'output window, operand 0']
    #allocation3 [shape = 's32[2]{0}', space=sflag, size = 0x8, scoped, tag = 'scoped memory for tpu_custom_call.1']
    %11 = vsyncpa [#allocation3], 0
    %s12 = scalar_lea.sflag [#allocation3], 1
    %13 = vsyncpa %s12, 0
    loop: start=0, step=1, limit=4
    $region2: #{tpu_custom_call.1} parent=1 // loop_pre_header
      _
    $region3: #{tpu_custom_call.1} parent=1 // loop_header
      %s15 = sphi 0, %s19
      %p16 = scmp.ge.s32.totalorder %s15, 4
      %s25 = sphi 0, %s27
      %s28 = sphi 0, %s25
      %s29 = sphi 0, %s28
      %s45 = sphi 0, %s29
      %s49 = sphi 0, %s49
      %s51 = sphi 0, %s49
      %s52 = sphi 0, %s51
      %s66 = sphi 0, %s52
      %s70 = sphi 0, %s70
      %s72 = sphi 0, %s70
      %s73 = sphi 0, %s72
      %s87 = sphi 0, %s73
      %s91 = sphi 0, %s91
      %s93 = sphi 0, %s91
      %s94 = sphi 0, %s93
      %s108 = sphi 0, %s94
      %s112 = sphi 0, %s112
      %s114 = sphi 0, %s112
      %s115 = sphi 0, %s114
      %s129 = sphi 0, %s115
      %s133 = sphi 0, %s133
      %s135 = sphi 0, %s133
      %s136 = sphi 0, %s135
      %s150 = sphi 0, %s136
      %s156 = sphi 0, %s158
      %s159 = sphi 0, %s156
      %s160 = sphi 0, %s159
      %s176 = sphi 0, %s160
    $region4: #{tpu_custom_call.1} parent=1 // loop_header_branch
      %18 = sbr.rel (%p16) target = $region8
    $region5: #{tpu_custom_call.1} parent=1 // loop_body
      %s20 = ssub.s32 %s15, 1
      %s21 = ssub.s32 %s15, 2
      %s22 = sadd.s32 %s15, 1
      %s23 = ssub.s32 %s15, %s22
      %p24 = scmp.eq.s32.totalorder %s23, 0
      %s26 = sadd.s32 %s25, 1
      %s27 = scalar_select %p24, %s25, %s26
      %p30 = pneg %p24
      %p31 = scmp.eq.s32.totalorder %s15, 1
      %p32 = por %p30, %p31
      %p33 = scmp.ne.s32.totalorder %s25, %s28
      %p34 = scmp.eq.s32.totalorder %s15, 0
      %p35 = por %p33, %p34
      %p36 = scmp.ne.s32.totalorder %s25, %s28
      %p37 = scmp.eq.s32.totalorder %s20, 1
      %p38 = por %p36, %p37
      %p39 = scmp.ne.s32.totalorder %s28, %s29
      %p40 = scmp.eq.s32.totalorder %s20, 0
      %p41 = por %p39, %p40
      %p42 = scmp.ne.s32.totalorder %s28, %s29
      %p43 = scmp.eq.s32.totalorder %s21, 1
      %p44 = por %p42, %p43
      %p46 = scmp.ne.s32.totalorder %s29, %s45
      %p47 = scmp.eq.s32.totalorder %s21, 0
      %p48 = por %p46, %p47
      %s50 = sadd.s32 %s49, 1
      %p53 = scmp.eq.s32.totalorder %s15, 1
      %p54 = scmp.ne.s32.totalorder %s49, %s51
      %p55 = scmp.eq.s32.totalorder %s15, 0
      %p56 = por %p54, %p55
      %p57 = scmp.ne.s32.totalorder %s49, %s51
      %p58 = scmp.eq.s32.totalorder %s20, 1
      %p59 = por %p57, %p58
      %p60 = scmp.ne.s32.totalorder %s51, %s52
      %p61 = scmp.eq.s32.totalorder %s20, 0
      %p62 = por %p60, %p61
      %p63 = scmp.ne.s32.totalorder %s51, %s52
      %p64 = scmp.eq.s32.totalorder %s21, 1
      %p65 = por %p63, %p64
      %p67 = scmp.ne.s32.totalorder %s52, %s66
      %p68 = scmp.eq.s32.totalorder %s21, 0
      %p69 = por %p67, %p68
      %s71 = sadd.s32 %s70, 1
      %p74 = scmp.eq.s32.totalorder %s15, 1
      %p75 = scmp.ne.s32.totalorder %s70, %s72
      %p76 = scmp.eq.s32.totalorder %s15, 0
      %p77 = por %p75, %p76
      %p78 = scmp.ne.s32.totalorder %s70, %s72
      %p79 = scmp.eq.s32.totalorder %s20, 1
      %p80 = por %p78, %p79
      %p81 = scmp.ne.s32.totalorder %s72, %s73
      %p82 = scmp.eq.s32.totalorder %s20, 0
      %p83 = por %p81, %p82
      %p84 = scmp.ne.s32.totalorder %s72, %s73
      %p85 = scmp.eq.s32.totalorder %s21, 1
      %p86 = por %p84, %p85
      %p88 = scmp.ne.s32.totalorder %s73, %s87
      %p89 = scmp.eq.s32.totalorder %s21, 0
      %p90 = por %p88, %p89
      %s92 = sadd.s32 %s91, 1
      %p95 = scmp.eq.s32.totalorder %s15, 1
      %p96 = scmp.ne.s32.totalorder %s91, %s93
      %p97 = scmp.eq.s32.totalorder %s15, 0
      %p98 = por %p96, %p97
      %p99 = scmp.ne.s32.totalorder %s91, %s93
      %p100 = scmp.eq.s32.totalorder %s20, 1
      %p101 = por %p99, %p100
      %p102 = scmp.ne.s32.totalorder %s93, %s94
      %p103 = scmp.eq.s32.totalorder %s20, 0
      %p104 = por %p102, %p103
      %p105 = scmp.ne.s32.totalorder %s93, %s94
      %p106 = scmp.eq.s32.totalorder %s21, 1
      %p107 = por %p105, %p106
      %p109 = scmp.ne.s32.totalorder %s94, %s108
      %p110 = scmp.eq.s32.totalorder %s21, 0
      %p111 = por %p109, %p110
      %s113 = sadd.s32 %s112, 1
      %p116 = scmp.eq.s32.totalorder %s15, 1
      %p117 = scmp.ne.s32.totalorder %s112, %s114
      %p118 = scmp.eq.s32.totalorder %s15, 0
      %p119 = por %p117, %p118
      %p120 = scmp.ne.s32.totalorder %s112, %s114
      %p121 = scmp.eq.s32.totalorder %s20, 1
      %p122 = por %p120, %p121
      %p123 = scmp.ne.s32.totalorder %s114, %s115
      %p124 = scmp.eq.s32.totalorder %s20, 0
      %p125 = por %p123, %p124
      %p126 = scmp.ne.s32.totalorder %s114, %s115
      %p127 = scmp.eq.s32.totalorder %s21, 1
      %p128 = por %p126, %p127
      %p130 = scmp.ne.s32.totalorder %s115, %s129
      %p131 = scmp.eq.s32.totalorder %s21, 0
      %p132 = por %p130, %p131
      %s134 = sadd.s32 %s133, 1
      %p137 = scmp.eq.s32.totalorder %s15, 1
      %p138 = scmp.ne.s32.totalorder %s133, %s135
      %p139 = scmp.eq.s32.totalorder %s15, 0
      %p140 = por %p138, %p139
      %p141 = scmp.ne.s32.totalorder %s133, %s135
      %p142 = scmp.eq.s32.totalorder %s20, 1
      %p143 = por %p141, %p142
      %p144 = scmp.ne.s32.totalorder %s135, %s136
      %p145 = scmp.eq.s32.totalorder %s20, 0
      %p146 = por %p144, %p145
      %p147 = scmp.ne.s32.totalorder %s135, %s136
      %p148 = scmp.eq.s32.totalorder %s21, 1
      %p149 = por %p147, %p148
      %p151 = scmp.ne.s32.totalorder %s136, %s150
      %p152 = scmp.eq.s32.totalorder %s21, 0
      %p153 = por %p151, %p152
      %s154 = ssub.s32 %s15, %s22
      %p155 = scmp.eq.s32.totalorder %s154, 0
      %s157 = sadd.s32 %s156, 1
      %s158 = scalar_select %p155, %s156, %s157
      %p161 = pneg %p155
      %p162 = scmp.eq.s32.totalorder %s15, 1
      %p163 = por %p161, %p162
      %p164 = scmp.ne.s32.totalorder %s156, %s159
      %p165 = scmp.eq.s32.totalorder %s15, 0
      %p166 = por %p164, %p165
      %p167 = scmp.ne.s32.totalorder %s156, %s159
      %p168 = scmp.eq.s32.totalorder %s20, 1
      %p169 = por %p167, %p168
      %p170 = scmp.ne.s32.totalorder %s159, %s160
      %p171 = scmp.eq.s32.totalorder %s20, 0
      %p172 = por %p170, %p171
      %p173 = scmp.ne.s32.totalorder %s159, %s160
      %p174 = scmp.eq.s32.totalorder %s21, 1
      %p175 = por %p173, %p174
      %p177 = scmp.ne.s32.totalorder %s160, %s176
      %p178 = scmp.eq.s32.totalorder %s21, 0
      %p179 = por %p177, %p178
      %p180 = scmp.le.s32.totalorder 1, %s15
      %p181 = scmp.lt.s32.totalorder %s15, 3
      %p182 = pnand %p180, %p181
      %p183 = pneg %p182
      // Predicated region
      $region9: #{tpu_custom_call.1} parent=5 // pred_check
        _
      $region10: #{tpu_custom_call.1} parent=5 // pred_check_branch
        %185 = sbr.rel (%p182) target = $region12
      $region11: #{tpu_custom_call.1} parent=5 // pred_region
        %s186 = ssub.s32 %s15, 1
        // Predicated region
        $region13: #{tpu_custom_call.1} parent=11 // pred_check
          %p187 = pneg %p62
        $region14: #{tpu_custom_call.1} parent=11 // pred_check_branch
          %189 = sbr.rel (%p187) target = $region16
        $region15: #{tpu_custom_call.1} parent=11 // pred_region
          _
        $region16: #{tpu_custom_call.1} parent=11 // pred_fallthru
          _
        // Predicated region
        $region17: #{tpu_custom_call.1} parent=11 // pred_check
          %p190 = pneg %p83
        $region18: #{tpu_custom_call.1} parent=11 // pred_check_branch
          %192 = sbr.rel (%p190) target = $region20
        $region19: #{tpu_custom_call.1} parent=11 // pred_region
          _
        $region20: #{tpu_custom_call.1} parent=11 // pred_fallthru
          _
        // Predicated region
        $region21: #{tpu_custom_call.1} parent=11 // pred_check
          %p193 = pneg %p104
        $region22: #{tpu_custom_call.1} parent=11 // pred_check_branch
          %195 = sbr.rel (%p193) target = $region24
        $region23: #{tpu_custom_call.1} parent=11 // pred_region
          _
        $region24: #{tpu_custom_call.1} parent=11 // pred_fallthru
          _
        // Predicated region
        $region25: #{tpu_custom_call.1} parent=11 // pred_check
          %p196 = pneg %p125
        $region26: #{tpu_custom_call.1} parent=11 // pred_check_branch
          %198 = sbr.rel (%p196) target = $region28
        $region27: #{tpu_custom_call.1} parent=11 // pred_region
          _
        $region28: #{tpu_custom_call.1} parent=11 // pred_fallthru
          _
        // Predicated region
        $region29: #{tpu_custom_call.1} parent=11 // pred_check
          %p199 = pneg %p146
        $region30: #{tpu_custom_call.1} parent=11 // pred_check_branch
          %201 = sbr.rel (%p199) target = $region32
        $region31: #{tpu_custom_call.1} parent=11 // pred_region
          _
        $region32: #{tpu_custom_call.1} parent=11 // pred_fallthru
          _
      $region12: #{tpu_custom_call.1} parent=5 // pred_fallthru
        _
      %p202 = scmp.lt.s32.totalorder %s15, 2
      // Predicated region
      $region33: #{tpu_custom_call.1} parent=5 // pred_check
        %p203 = pneg %p202
      $region34: #{tpu_custom_call.1} parent=5 // pred_check_branch
        %205 = sbr.rel (%p203) target = $region36
      $region35: #{tpu_custom_call.1} parent=5 // pred_region
        // Predicated region
        $region37: #{tpu_custom_call.1} parent=35 // pred_check
          %p206 = pneg %p35
        $region38: #{tpu_custom_call.1} parent=35 // pred_check_branch
          %208 = sbr.rel (%p206) target = $region40
        $region39: #{tpu_custom_call.1} parent=35 // pred_region
          %s209 = smul.u32 16, %s15
          %p210 = scmp.lt.s32.totalorder %s209, 31
          %s211 = scalar_select %p210, %s209, 31
          %s212 = smul.addr %s211, 4
          %s213 = scalar_lea.vmem %s0, %s212
          %s214 = smul.u32 16, %s15
        $region40: #{tpu_custom_call.1} parent=35 // pred_fallthru
          _
      $region36: #{tpu_custom_call.1} parent=5 // pred_fallthru
        _
      %p215 = scmp.le.s32.totalorder 1, %s15
      %p216 = scmp.lt.s32.totalorder %s15, 3
      %p217 = pnand %p215, %p216
      %p218 = pneg %p217
      // Predicated region
      $region41: #{tpu_custom_call.1} parent=5 // pred_check
        _
      $region42: #{tpu_custom_call.1} parent=5 // pred_check_branch
        %220 = sbr.rel (%p217) target = $region44
      $region43: #{tpu_custom_call.1} parent=5 // pred_region
        %s221 = ssub.s32 %s15, 1
        %s222 = smul.u32 16, %s20
        %p223 = scmp.lt.s32.totalorder %s222, 31
        %s224 = scalar_select %p223, %s222, 31
        %s225 = smul.addr %s224, 4
        %s226 = scalar_lea.vmem %s0, %s225
        %p227 = pneg %p41
        %p228 = pneg %p38
        %p229 = pneg %p62
        %p230 = pneg %p59
        %p231 = pneg %p83
        %p232 = pneg %p80
        %p233 = pneg %p104
        %p234 = pneg %p101
        %p235 = pneg %p125
        %p236 = pneg %p122
        %p237 = pneg %p146
        %p238 = pneg %p143
        %p239 = pneg %p172
        %p240 = pneg %p169
        %s241 = sand.u32 %s159, 1
        %s242 = scalar_lea.sflag [#allocation3], %s241
        %s243 = sand.u32 %s159, 1
        %s244 = smul.addr %s243, 128
        %s245 = scalar_lea.vmem [#allocation2], %s244
        %s246 = smul.u32 16, %s20
        %p247 = scmp.lt.s32.totalorder %s246, 31
        %s248 = scalar_select %p247, %s246, 31
        %s249 = smul.addr %s248, 4
        %s250 = scalar_lea.vmem %s0, %s249
        %s251 = smul.u32 16, %s20
        %s252 = smul.u32 16, %s20
        %v254 = vld [vmem:[%s1] sm:$0xf]
        %v255 = vld [vmem:[%s1 + $0x4] sm:$0xf]
        %v256 = vld [vmem:[%s1 + $0x8] sm:$0xf]
        %v257 = vld [vmem:[%s1 + $0xc] sm:$0xf]
        %v258 = vld [vmem:[%s1 + $0x10] sm:$0xf]
        %v259 = vld [vmem:[%s1 + $0x14] sm:$0xf]
        %v260 = vld [vmem:[%s1 + $0x18] sm:$0xf]
        %v261 = vld [vmem:[%s1 + $0x1c] sm:$0xf]
        %v262 = vld [vmem:[%s2] sm:$0xf]
        %v263 = vld [vmem:[%s2 + $0x4] sm:$0xf]
        %v264 = vld [vmem:[%s2 + $0x8] sm:$0xf]
        %v265 = vld [vmem:[%s2 + $0xc] sm:$0xf]
        %v266 = vld [vmem:[%s2 + $0x10] sm:$0xf]
        %v267 = vld [vmem:[%s2 + $0x14] sm:$0xf]
        %v268 = vld [vmem:[%s2 + $0x18] sm:$0xf]
        %v269 = vld [vmem:[%s2 + $0x1c] sm:$0xf]
        %v270 = vld [vmem:[%s2 + $0x20] sm:$0xf]
        %v271 = vld [vmem:[%s2 + $0x24] sm:$0xf]
        %v272 = vld [vmem:[%s2 + $0x28] sm:$0xf]
        %v273 = vld [vmem:[%s2 + $0x2c] sm:$0xf]
        %v274 = vld [vmem:[%s2 + $0x30] sm:$0xf]
        %v275 = vld [vmem:[%s2 + $0x34] sm:$0xf]
        %v276 = vld [vmem:[%s2 + $0x38] sm:$0xf]
        %v277 = vld [vmem:[%s2 + $0x3c] sm:$0xf]
        %v278 = vld [vmem:[%s2 + $0x40] sm:$0xf]
        %v279 = vld [vmem:[%s2 + $0x44] sm:$0xf]
        %v280 = vld [vmem:[%s2 + $0x48] sm:$0xf]
        %v281 = vld [vmem:[%s2 + $0x4c] sm:$0xf]
        %v282 = vld [vmem:[%s2 + $0x50] sm:$0xf]
        %v283 = vld [vmem:[%s2 + $0x54] sm:$0xf]
        %v284 = vld [vmem:[%s2 + $0x58] sm:$0xf]
        %v285 = vld [vmem:[%s2 + $0x5c] sm:$0xf]
        %v286 = vld [vmem:[%s3] sm:$0x1]
        %v287 = vld [vmem:[%s3 + $0x1] sm:$0x1]
        %v288 = vld [vmem:[%s3 + $0x2] sm:$0x1]
        %v289 = vld [vmem:[%s3 + $0x3] sm:$0x1]
        %v290 = vld [vmem:[%s4] sm:$0xf]
        %v291 = vld [vmem:[%s4 + $0x4] sm:$0xf]
        %v292 = vld [vmem:[%s4 + $0x8] sm:$0xf]
        %v293 = vld [vmem:[%s4 + $0xc] sm:$0xf]
        %v294 = vld [vmem:[%s4 + $0x10] sm:$0xf]
        %v295 = vld [vmem:[%s4 + $0x14] sm:$0xf]
        %v296 = vld [vmem:[%s4 + $0x18] sm:$0xf]
        %v297 = vld [vmem:[%s4 + $0x1c] sm:$0xf]
        %v298 = vld [vmem:[%s5] sm:$0x1]
        %v299 = vld [vmem:[%s250] sm:$0xf]
        %v300 = vld [vmem:[%s250 + $0x4] sm:$0xf]
        %v301 = vld [vmem:[%s250 + $0x8] sm:$0xf]
        %v302 = vld [vmem:[%s250 + $0xc] sm:$0xf]
        %v303 = vld [vmem:[%s250 + $0x10] sm:$0xf]
        %v304 = vld [vmem:[%s250 + $0x14] sm:$0xf]
        %v305 = vld [vmem:[%s250 + $0x18] sm:$0xf]
        %v306 = vld [vmem:[%s250 + $0x1c] sm:$0xf]
        %v307 = vld [vmem:[%s250 + $0x20] sm:$0xf]
        %v308 = vld [vmem:[%s250 + $0x24] sm:$0xf]
        %v309 = vld [vmem:[%s250 + $0x28] sm:$0xf]
        %v310 = vld [vmem:[%s250 + $0x2c] sm:$0xf]
        %v311 = vld [vmem:[%s250 + $0x30] sm:$0xf]
        %v312 = vld [vmem:[%s250 + $0x34] sm:$0xf]
        %v313 = vld [vmem:[%s250 + $0x38] sm:$0xf]
        %v314 = vld [vmem:[%s250 + $0x3c] sm:$0xf]
        %v316 = vlaneseq
        %v317 = vshrl.u32 %v316, 7
        %v318 = vsub.s32 0, %v317
        %v319 = vrot.slane %v286, %v318
        %v337 = vunpack.c.l.b16 %v299
        %v338 = vunpack.c.l.b16 %v300
        %v339 = vunpack.c.l.b16 %v301
        %v340 = vunpack.c.l.b16 %v302
        %v341 = vunpack.c.l.b16 %v303
        %v342 = vunpack.c.l.b16 %v304
        %v343 = vunpack.c.l.b16 %v305
        %v344 = vunpack.c.l.b16 %v306
        %v345 = vunpack.c.l.b16 %v307
        %v346 = vunpack.c.l.b16 %v308
        %v347 = vunpack.c.l.b16 %v309
        %v348 = vunpack.c.l.b16 %v310
        %v349 = vunpack.c.l.b16 %v311
        %v350 = vunpack.c.l.b16 %v312
        %v351 = vunpack.c.l.b16 %v313
        %v352 = vunpack.c.l.b16 %v314
        %v353 = vpack.c.b16 %v338, %v337
        %v354 = vpack.c.b16 %v340, %v339
        %v355 = vpack.c.b16 %v342, %v341
        %v356 = vpack.c.b16 %v344, %v343
        %v357 = vpack.c.b16 %v346, %v345
        %v358 = vpack.c.b16 %v348, %v347
        %v359 = vpack.c.b16 %v350, %v349
        %v360 = vpack.c.b16 %v352, %v351
        %v369 = vunpack.c.l.b16 %v254
        %v370 = vunpack.c.l.b16 %v255
        %v371 = vunpack.c.l.b16 %v256
        %v372 = vunpack.c.l.b16 %v257
        %v373 = vunpack.c.l.b16 %v258
        %v374 = vunpack.c.l.b16 %v259
        %v375 = vunpack.c.l.b16 %v260
        %v376 = vunpack.c.l.b16 %v261
        %v377 = vpack.c.b16 %v370, %v369
        %v378 = vpack.c.b16 %v372, %v371
        %v379 = vpack.c.b16 %v374, %v373
        %v380 = vpack.c.b16 %v376, %v375
        %vm385 = vcmask 523264
        %v387 = vsel %vm385, %v353, 0
        %v390 = vsel %vm385, %v354, 0
        %v393 = vsel %vm385, %v355, 0
        %v396 = vsel %vm385, %v356, 0
        %v399 = vsel %vm385, %v357, 0
        %v402 = vsel %vm385, %v358, 0
        %v405 = vsel %vm385, %v359, 0
        %v408 = vsel %vm385, %v360, 0
        %410 = vmatprep.subr.bf16.mxu0 0
        %411 = vmatpush1.bf16.msra.mxu0 %v377
        %412 = vmatprep.subr.bf16.mxu0 0
        %413 = vmatpush1.bf16.msra.mxu0 %v378
        %414 = vmatprep.subr.bf16.mxu0 0
        %415 = vmatpush1.bf16.msra.mxu0 %v379
        %416 = vmatprep.subr.bf16.mxu0 0
        %417 = vmatpush1.bf16.msra.mxu0 %v380
        %418 = vmatprep.subr.bf16.mxu0 0
        %419 = vmatpush1.bf16.msra.mxu0 0
        %420 = vmatprep.subr.bf16.mxu0 0
        %421 = vmatpush1.bf16.msra.mxu0 0
        %422 = vmatprep.subr.bf16.mxu0 0
        %423 = vmatpush1.bf16.msra.mxu0 0
        %424 = vmatprep.subr.bf16.mxu0 0
        %425 = vmatpush1.bf16.msra.mxu0 0
        %426 = vmatprep.subr.bf16.mxu0 0
        %427 = vmatpush1.bf16.msra.mxu0 0
        %428 = vmatprep.subr.bf16.mxu0 0
        %429 = vmatpush1.bf16.msra.mxu0 0
        %430 = vmatprep.subr.bf16.mxu0 0
        %431 = vmatpush1.bf16.msra.mxu0 0
        %432 = vmatprep.subr.bf16.mxu0 0
        %433 = vmatpush1.bf16.msra.mxu0 0
        %434 = vmatprep.subr.bf16.mxu0 0
        %435 = vmatpush1.bf16.msra.mxu0 0
        %436 = vmatprep.subr.bf16.mxu0 0
        %437 = vmatpush1.bf16.msra.mxu0 0
        %438 = vmatprep.subr.bf16.mxu0 0
        %439 = vmatpush1.bf16.msra.mxu0 0
        %440 = vmatprep.subr.bf16.mxu0 0
        %441 = vmatpush1.bf16.msra.mxu0 0
        %442 = vmatprep.mubr.bf16.mxu0 0
        %443 = vmatmul.mubr.bf16.gmra.mrb[0].mxu0 %v387
        %v444 = vpop.f32.mrb[0].mxu0
        %v445 = vadd.f32 %v319, %v444
        %v446 = vpop.f32.mrb[0].mxu0
        %v447 = vpop.f32.mrb[0].mxu0
        %v448 = vadd.f32 %v319, %v447
        %v449 = vpop.f32.mrb[0].mxu0
        %450 = vmatprep.mubr.bf16.mxu0 0
        %451 = vmatmul.mubr.bf16.gmra.mrb[0].mxu0 %v390
        %v452 = vpop.f32.mrb[0].mxu0
        %v453 = vadd.f32 %v319, %v452
        %v454 = vpop.f32.mrb[0].mxu0
        %v455 = vpop.f32.mrb[0].mxu0
        %v456 = vadd.f32 %v319, %v455
        %v457 = vpop.f32.mrb[0].mxu0
        %458 = vmatprep.mubr.bf16.mxu0 0
        %459 = vmatmul.mubr.bf16.gmra.mrb[0].mxu0 %v393
        %v460 = vpop.f32.mrb[0].mxu0
        %v461 = vadd.f32 %v319, %v460
        %v462 = vpop.f32.mrb[0].mxu0
        %v463 = vpop.f32.mrb[0].mxu0
        %v464 = vadd.f32 %v319, %v463
        %v465 = vpop.f32.mrb[0].mxu0
        %466 = vmatprep.mubr.bf16.mxu0 0
        %467 = vmatmul.mubr.bf16.gmra.mrb[0].mxu0 %v396
        %v468 = vpop.f32.mrb[0].mxu0
        %v469 = vadd.f32 %v319, %v468
        %v470 = vpop.f32.mrb[0].mxu0
        %v471 = vpop.f32.mrb[0].mxu0
        %v472 = vadd.f32 %v319, %v471
        %v473 = vpop.f32.mrb[0].mxu0
        %474 = vmatprep.mubr.bf16.mxu0 0
        %475 = vmatmul.mubr.bf16.gmra.mrb[0].mxu0 %v399
        %v476 = vpop.f32.mrb[0].mxu0
        %v477 = vadd.f32 %v319, %v476
        %v478 = vpop.f32.mrb[0].mxu0
        %v479 = vpop.f32.mrb[0].mxu0
        %v480 = vadd.f32 %v319, %v479
        %v481 = vpop.f32.mrb[0].mxu0
        %482 = vmatprep.mubr.bf16.mxu0 0
        %483 = vmatmul.mubr.bf16.gmra.mrb[0].mxu0 %v402
        %v484 = vpop.f32.mrb[0].mxu0
        %v485 = vadd.f32 %v319, %v484
        %v486 = vpop.f32.mrb[0].mxu0
        %v487 = vpop.f32.mrb[0].mxu0
        %v488 = vadd.f32 %v319, %v487
        %v489 = vpop.f32.mrb[0].mxu0
        %490 = vmatprep.mubr.bf16.mxu0 0
        %491 = vmatmul.mubr.bf16.gmra.mrb[0].mxu0 %v405
        %v492 = vpop.f32.mrb[0].mxu0
        %v493 = vadd.f32 %v319, %v492
        %v494 = vpop.f32.mrb[0].mxu0
        %v495 = vpop.f32.mrb[0].mxu0
        %v496 = vadd.f32 %v319, %v495
        %v497 = vpop.f32.mrb[0].mxu0
        %498 = vmatprep.mubr.bf16.mxu0 0
        %499 = vmatmul.mubr.bf16.gmra.mrb[0].mxu0 %v408
        %v500 = vpop.f32.mrb[0].mxu0
        %v501 = vadd.f32 %v319, %v500
        %v502 = vpop.f32.mrb[0].mxu0
        %v503 = vpop.f32.mrb[0].mxu0
        %v504 = vadd.f32 %v319, %v503
        %v505 = vpop.f32.mrb[0].mxu0
        %506 = vdwg.mxu0
        %v507 = vmax.f32 %v445, 0.0
        %v508 = vmax.f32 %v448, 0.0
        %v509 = vmax.f32 %v453, 0.0
        %v510 = vmax.f32 %v456, 0.0
        %v511 = vmax.f32 %v461, 0.0
        %v512 = vmax.f32 %v464, 0.0
        %v513 = vmax.f32 %v469, 0.0
        %v514 = vmax.f32 %v472, 0.0
        %v515 = vmax.f32 %v477, 0.0
        %v516 = vmax.f32 %v480, 0.0
        %v517 = vmax.f32 %v485, 0.0
        %v518 = vmax.f32 %v488, 0.0
        %v519 = vmax.f32 %v493, 0.0
        %v520 = vmax.f32 %v496, 0.0
        %v521 = vmax.f32 %v501, 0.0
        %v522 = vmax.f32 %v504, 0.0
        %v523 = vpack.c.bf16 %v508, %v507
        %v524 = vpack.c.bf16 %v510, %v509
        %v525 = vpack.c.bf16 %v512, %v511
        %v526 = vpack.c.bf16 %v514, %v513
        %v527 = vpack.c.bf16 %v516, %v515
        %v528 = vpack.c.bf16 %v518, %v517
        %v529 = vpack.c.bf16 %v520, %v519
        %v530 = vpack.c.bf16 %v522, %v521
        %v532 = vlaneseq
        %v533 = vshrl.u32 %v532, 7
        %v534 = vsub.s32 0, %v533
        %v535 = vrot.slane %v287, %v534
        %v545 = vunpack.c.l.b16 %v262
        %v546 = vunpack.c.l.b16 %v263
        %v547 = vunpack.c.l.b16 %v264
        %v548 = vunpack.c.l.b16 %v265
        %v549 = vunpack.c.l.b16 %v266
        %v550 = vunpack.c.l.b16 %v267
        %v551 = vunpack.c.l.b16 %v268
        %v552 = vunpack.c.l.b16 %v269
        %v553 = vpack.c.b16 %v546, %v545
        %v554 = vpack.c.b16 %v548, %v547
        %v555 = vpack.c.b16 %v550, %v549
        %v556 = vpack.c.b16 %v552, %v551
        %v562 = vsel %vm385, %v523, 0
        %v565 = vsel %vm385, %v524, 0
        %v568 = vsel %vm385, %v525, 0
        %v571 = vsel %vm385, %v526, 0
        %v574 = vsel %vm385, %v527, 0
        %v577 = vsel %vm385, %v528, 0
        %v580 = vsel %vm385, %v529, 0
        %v583 = vsel %vm385, %v530, 0
        %585 = vmatprep.subr.bf16.mxu0 0
        %586 = vmatpush1.bf16.msra.mxu0 %v553
        %587 = vmatprep.subr.bf16.mxu0 0
        %588 = vmatpush1.bf16.msra.mxu0 %v554
        %589 = vmatprep.subr.bf16.mxu0 0
        %590 = vmatpush1.bf16.msra.mxu0 %v555
        %591 = vmatprep.subr.bf16.mxu0 0
        %592 = vmatpush1.bf16.msra.mxu0 %v556
        %593 = vmatprep.subr.bf16.mxu0 0
        %594 = vmatpush1.bf16.msra.mxu0 0
        %595 = vmatprep.subr.bf16.mxu0 0
        %596 = vmatpush1.bf16.msra.mxu0 0
        %597 = vmatprep.subr.bf16.mxu0 0
        %598 = vmatpush1.bf16.msra.mxu0 0
        %599 = vmatprep.subr.bf16.mxu0 0
        %600 = vmatpush1.bf16.msra.mxu0 0
        %601 = vmatprep.subr.bf16.mxu0 0
        %602 = vmatpush1.bf16.msra.mxu0 0
        %603 = vmatprep.subr.bf16.mxu0 0
        %604 = vmatpush1.bf16.msra.mxu0 0
        %605 = vmatprep.subr.bf16.mxu0 0
        %606 = vmatpush1.bf16.msra.mxu0 0
        %607 = vmatprep.subr.bf16.mxu0 0
        %608 = vmatpush1.bf16.msra.mxu0 0
        %609 = vmatprep.subr.bf16.mxu0 0
        %610 = vmatpush1.bf16.msra.mxu0 0
        %611 = vmatprep.subr.bf16.mxu0 0
        %612 = vmatpush1.bf16.msra.mxu0 0
        %613 = vmatprep.subr.bf16.mxu0 0
        %614 = vmatpush1.bf16.msra.mxu0 0
        %615 = vmatprep.subr.bf16.mxu0 0
        %616 = vmatpush1.bf16.msra.mxu0 0
        %617 = vmatprep.mubr.bf16.mxu0 0
        %618 = vmatmul.mubr.bf16.gmra.mrb[0].mxu0 %v562
        %v619 = vpop.f32.mrb[0].mxu0
        %v620 = vadd.f32 %v535, %v619
        %v621 = vpop.f32.mrb[0].mxu0
        %v622 = vpop.f32.mrb[0].mxu0
        %v623 = vadd.f32 %v535, %v622
        %v624 = vpop.f32.mrb[0].mxu0
        %625 = vmatprep.mubr.bf16.mxu0 0
        %626 = vmatmul.mubr.bf16.gmra.mrb[0].mxu0 %v565
        %v627 = vpop.f32.mrb[0].mxu0
        %v628 = vadd.f32 %v535, %v627
        %v629 = vpop.f32.mrb[0].mxu0
        %v630 = vpop.f32.mrb[0].mxu0
        %v631 = vadd.f32 %v535, %v630
        %v632 = vpop.f32.mrb[0].mxu0
        %633 = vmatprep.mubr.bf16.mxu0 0
        %634 = vmatmul.mubr.bf16.gmra.mrb[0].mxu0 %v568
        %v635 = vpop.f32.mrb[0].mxu0
        %v636 = vadd.f32 %v535, %v635
        %v637 = vpop.f32.mrb[0].mxu0
        %v638 = vpop.f32.mrb[0].mxu0
        %v639 = vadd.f32 %v535, %v638
        %v640 = vpop.f32.mrb[0].mxu0
        %641 = vmatprep.mubr.bf16.mxu0 0
        %642 = vmatmul.mubr.bf16.gmra.mrb[0].mxu0 %v571
        %v643 = vpop.f32.mrb[0].mxu0
        %v644 = vadd.f32 %v535, %v643
        %v645 = vpop.f32.mrb[0].mxu0
        %v646 = vpop.f32.mrb[0].mxu0
        %v647 = vadd.f32 %v535, %v646
        %v648 = vpop.f32.mrb[0].mxu0
        %649 = vmatprep.mubr.bf16.mxu0 0
        %650 = vmatmul.mubr.bf16.gmra.mrb[0].mxu0 %v574
        %v651 = vpop.f32.mrb[0].mxu0
        %v652 = vadd.f32 %v535, %v651
        %v653 = vpop.f32.mrb[0].mxu0
        %v654 = vpop.f32.mrb[0].mxu0
        %v655 = vadd.f32 %v535, %v654
        %v656 = vpop.f32.mrb[0].mxu0
        %657 = vmatprep.mubr.bf16.mxu0 0
        %658 = vmatmul.mubr.bf16.gmra.mrb[0].mxu0 %v577
        %v659 = vpop.f32.mrb[0].mxu0
        %v660 = vadd.f32 %v535, %v659
        %v661 = vpop.f32.mrb[0].mxu0
        %v662 = vpop.f32.mrb[0].mxu0
        %v663 = vadd.f32 %v535, %v662
        %v664 = vpop.f32.mrb[0].mxu0
        %665 = vmatprep.mubr.bf16.mxu0 0
        %666 = vmatmul.mubr.bf16.gmra.mrb[0].mxu0 %v580
        %v667 = vpop.f32.mrb[0].mxu0
        %v668 = vadd.f32 %v535, %v667
        %v669 = vpop.f32.mrb[0].mxu0
        %v670 = vpop.f32.mrb[0].mxu0
        %v671 = vadd.f32 %v535, %v670
        %v672 = vpop.f32.mrb[0].mxu0
        %673 = vmatprep.mubr.bf16.mxu0 0
        %674 = vmatmul.mubr.bf16.gmra.mrb[0].mxu0 %v583
        %v675 = vpop.f32.mrb[0].mxu0
        %v676 = vadd.f32 %v535, %v675
        %v677 = vpop.f32.mrb[0].mxu0
        %v678 = vpop.f32.mrb[0].mxu0
        %v679 = vadd.f32 %v535, %v678
        %v680 = vpop.f32.mrb[0].mxu0
        %681 = vdwg.mxu0
        %v682 = vmax.f32 %v620, 0.0
        %v683 = vmax.f32 %v623, 0.0
        %v684 = vmax.f32 %v628, 0.0
        %v685 = vmax.f32 %v631, 0.0
        %v686 = vmax.f32 %v636, 0.0
        %v687 = vmax.f32 %v639, 0.0
        %v688 = vmax.f32 %v644, 0.0
        %v689 = vmax.f32 %v647, 0.0
        %v690 = vmax.f32 %v652, 0.0
        %v691 = vmax.f32 %v655, 0.0
        %v692 = vmax.f32 %v660, 0.0
        %v693 = vmax.f32 %v663, 0.0
        %v694 = vmax.f32 %v668, 0.0
        %v695 = vmax.f32 %v671, 0.0
        %v696 = vmax.f32 %v676, 0.0
        %v697 = vmax.f32 %v679, 0.0
        %v698 = vpack.c.bf16 %v683, %v682
        %v699 = vpack.c.bf16 %v685, %v684
        %v700 = vpack.c.bf16 %v687, %v686
        %v701 = vpack.c.bf16 %v689, %v688
        %v702 = vpack.c.bf16 %v691, %v690
        %v703 = vpack.c.bf16 %v693, %v692
        %v704 = vpack.c.bf16 %v695, %v694
        %v705 = vpack.c.bf16 %v697, %v696
        %v707 = vlaneseq
        %v708 = vshrl.u32 %v707, 7
        %v709 = vsub.s32 0, %v708
        %v710 = vrot.slane %v288, %v709
        %v720 = vunpack.c.l.b16 %v270
        %v721 = vunpack.c.l.b16 %v271
        %v722 = vunpack.c.l.b16 %v272
        %v723 = vunpack.c.l.b16 %v273
        %v724 = vunpack.c.l.b16 %v274
        %v725 = vunpack.c.l.b16 %v275
        %v726 = vunpack.c.l.b16 %v276
        %v727 = vunpack.c.l.b16 %v277
        %v728 = vpack.c.b16 %v721, %v720
        %v729 = vpack.c.b16 %v723, %v722
        %v730 = vpack.c.b16 %v725, %v724
        %v731 = vpack.c.b16 %v727, %v726
        %v737 = vsel %vm385, %v698, 0
        %v740 = vsel %vm385, %v699, 0
        %v743 = vsel %vm385, %v700, 0
        %v746 = vsel %vm385, %v701, 0
        %v749 = vsel %vm385, %v702, 0
        %v752 = vsel %vm385, %v703, 0
        %v755 = vsel %vm385, %v704, 0
        %v758 = vsel %vm385, %v705, 0
        %760 = vmatprep.subr.bf16.mxu0 0
        %761 = vmatpush1.bf16.msra.mxu0 %v728
        %762 = vmatprep.subr.bf16.mxu0 0
        %763 = vmatpush1.bf16.msra.mxu0 %v729
        %764 = vmatprep.subr.bf16.mxu0 0
        %765 = vmatpush1.bf16.msra.mxu0 %v730
        %766 = vmatprep.subr.bf16.mxu0 0
        %767 = vmatpush1.bf16.msra.mxu0 %v731
        %768 = vmatprep.subr.bf16.mxu0 0
        %769 = vmatpush1.bf16.msra.mxu0 0
        %770 = vmatprep.subr.bf16.mxu0 0
        %771 = vmatpush1.bf16.msra.mxu0 0
        %772 = vmatprep.subr.bf16.mxu0 0
        %773 = vmatpush1.bf16.msra.mxu0 0
        %774 = vmatprep.subr.bf16.mxu0 0
        %775 = vmatpush1.bf16.msra.mxu0 0
        %776 = vmatprep.subr.bf16.mxu0 0
        %777 = vmatpush1.bf16.msra.mxu0 0
        %778 = vmatprep.subr.bf16.mxu0 0
        %779 = vmatpush1.bf16.msra.mxu0 0
        %780 = vmatprep.subr.bf16.mxu0 0
        %781 = vmatpush1.bf16.msra.mxu0 0
        %782 = vmatprep.subr.bf16.mxu0 0
        %783 = vmatpush1.bf16.msra.mxu0 0
        %784 = vmatprep.subr.bf16.mxu0 0
        %785 = vmatpush1.bf16.msra.mxu0 0
        %786 = vmatprep.subr.bf16.mxu0 0
        %787 = vmatpush1.bf16.msra.mxu0 0
        %788 = vmatprep.subr.bf16.mxu0 0
        %789 = vmatpush1.bf16.msra.mxu0 0
        %790 = vmatprep.subr.bf16.mxu0 0
        %791 = vmatpush1.bf16.msra.mxu0 0
        %792 = vmatprep.mubr.bf16.mxu0 0
        %793 = vmatmul.mubr.bf16.gmra.mrb[0].mxu0 %v737
        %v794 = vpop.f32.mrb[0].mxu0
        %v795 = vadd.f32 %v710, %v794
        %v796 = vpop.f32.mrb[0].mxu0
        %v797 = vpop.f32.mrb[0].mxu0
        %v798 = vadd.f32 %v710, %v797
        %v799 = vpop.f32.mrb[0].mxu0
        %800 = vmatprep.mubr.bf16.mxu0 0
        %801 = vmatmul.mubr.bf16.gmra.mrb[0].mxu0 %v740
        %v802 = vpop.f32.mrb[0].mxu0
        %v803 = vadd.f32 %v710, %v802
        %v804 = vpop.f32.mrb[0].mxu0
        %v805 = vpop.f32.mrb[0].mxu0
        %v806 = vadd.f32 %v710, %v805
        %v807 = vpop.f32.mrb[0].mxu0
        %808 = vmatprep.mubr.bf16.mxu0 0
        %809 = vmatmul.mubr.bf16.gmra.mrb[0].mxu0 %v743
        %v810 = vpop.f32.mrb[0].mxu0
        %v811 = vadd.f32 %v710, %v810
        %v812 = vpop.f32.mrb[0].mxu0
        %v813 = vpop.f32.mrb[0].mxu0
        %v814 = vadd.f32 %v710, %v813
        %v815 = vpop.f32.mrb[0].mxu0
        %816 = vmatprep.mubr.bf16.mxu0 0
        %817 = vmatmul.mubr.bf16.gmra.mrb[0].mxu0 %v746
        %v818 = vpop.f32.mrb[0].mxu0
        %v819 = vadd.f32 %v710, %v818
        %v820 = vpop.f32.mrb[0].mxu0
        %v821 = vpop.f32.mrb[0].mxu0
        %v822 = vadd.f32 %v710, %v821
        %v823 = vpop.f32.mrb[0].mxu0
        %824 = vmatprep.mubr.bf16.mxu0 0
        %825 = vmatmul.mubr.bf16.gmra.mrb[0].mxu0 %v749
        %v826 = vpop.f32.mrb[0].mxu0
        %v827 = vadd.f32 %v710, %v826
        %v828 = vpop.f32.mrb[0].mxu0
        %v829 = vpop.f32.mrb[0].mxu0
        %v830 = vadd.f32 %v710, %v829
        %v831 = vpop.f32.mrb[0].mxu0
        %832 = vmatprep.mubr.bf16.mxu0 0
        %833 = vmatmul.mubr.bf16.gmra.mrb[0].mxu0 %v752
        %v834 = vpop.f32.mrb[0].mxu0
        %v835 = vadd.f32 %v710, %v834
        %v836 = vpop.f32.mrb[0].mxu0
        %v837 = vpop.f32.mrb[0].mxu0
        %v838 = vadd.f32 %v710, %v837
        %v839 = vpop.f32.mrb[0].mxu0
        %840 = vmatprep.mubr.bf16.mxu0 0
        %841 = vmatmul.mubr.bf16.gmra.mrb[0].mxu0 %v755
        %v842 = vpop.f32.mrb[0].mxu0
        %v843 = vadd.f32 %v710, %v842
        %v844 = vpop.f32.mrb[0].mxu0
        %v845 = vpop.f32.mrb[0].mxu0
        %v846 = vadd.f32 %v710, %v845
        %v847 = vpop.f32.mrb[0].mxu0
        %848 = vmatprep.mubr.bf16.mxu0 0
        %849 = vmatmul.mubr.bf16.gmra.mrb[0].mxu0 %v758
        %v850 = vpop.f32.mrb[0].mxu0
        %v851 = vadd.f32 %v710, %v850
        %v852 = vpop.f32.mrb[0].mxu0
        %v853 = vpop.f32.mrb[0].mxu0
        %v854 = vadd.f32 %v710, %v853
        %v855 = vpop.f32.mrb[0].mxu0
        %856 = vdwg.mxu0
        %v857 = vmax.f32 %v795, 0.0
        %v858 = vmax.f32 %v798, 0.0
        %v859 = vmax.f32 %v803, 0.0
        %v860 = vmax.f32 %v806, 0.0
        %v861 = vmax.f32 %v811, 0.0
        %v862 = vmax.f32 %v814, 0.0
        %v863 = vmax.f32 %v819, 0.0
        %v864 = vmax.f32 %v822, 0.0
        %v865 = vmax.f32 %v827, 0.0
        %v866 = vmax.f32 %v830, 0.0
        %v867 = vmax.f32 %v835, 0.0
        %v868 = vmax.f32 %v838, 0.0
        %v869 = vmax.f32 %v843, 0.0
        %v870 = vmax.f32 %v846, 0.0
        %v871 = vmax.f32 %v851, 0.0
        %v872 = vmax.f32 %v854, 0.0
        %v873 = vpack.c.bf16 %v858, %v857
        %v874 = vpack.c.bf16 %v860, %v859
        %v875 = vpack.c.bf16 %v862, %v861
        %v876 = vpack.c.bf16 %v864, %v863
        %v877 = vpack.c.bf16 %v866, %v865
        %v878 = vpack.c.bf16 %v868, %v867
        %v879 = vpack.c.bf16 %v870, %v869
        %v880 = vpack.c.bf16 %v872, %v871
        %v882 = vlaneseq
        %v883 = vshrl.u32 %v882, 7
        %v884 = vsub.s32 0, %v883
        %v885 = vrot.slane %v289, %v884
        %v895 = vunpack.c.l.b16 %v278
        %v896 = vunpack.c.l.b16 %v279
        %v897 = vunpack.c.l.b16 %v280
        %v898 = vunpack.c.l.b16 %v281
        %v899 = vunpack.c.l.b16 %v282
        %v900 = vunpack.c.l.b16 %v283
        %v901 = vunpack.c.l.b16 %v284
        %v902 = vunpack.c.l.b16 %v285
        %v903 = vpack.c.b16 %v896, %v895
        %v904 = vpack.c.b16 %v898, %v897
        %v905 = vpack.c.b16 %v900, %v899
        %v906 = vpack.c.b16 %v902, %v901
        %v912 = vsel %vm385, %v873, 0
        %v915 = vsel %vm385, %v874, 0
        %v918 = vsel %vm385, %v875, 0
        %v921 = vsel %vm385, %v876, 0
        %v924 = vsel %vm385, %v877, 0
        %v927 = vsel %vm385, %v878, 0
        %v930 = vsel %vm385, %v879, 0
        %v933 = vsel %vm385, %v880, 0
        %935 = vmatprep.subr.bf16.mxu0 0
        %936 = vmatpush1.bf16.msra.mxu0 %v903
        %937 = vmatprep.subr.bf16.mxu0 0
        %938 = vmatpush1.bf16.msra.mxu0 %v904
        %939 = vmatprep.subr.bf16.mxu0 0
        %940 = vmatpush1.bf16.msra.mxu0 %v905
        %941 = vmatprep.subr.bf16.mxu0 0
        %942 = vmatpush1.bf16.msra.mxu0 %v906
        %943 = vmatprep.subr.bf16.mxu0 0
        %944 = vmatpush1.bf16.msra.mxu0 0
        %945 = vmatprep.subr.bf16.mxu0 0
        %946 = vmatpush1.bf16.msra.mxu0 0
        %947 = vmatprep.subr.bf16.mxu0 0
        %948 = vmatpush1.bf16.msra.mxu0 0
        %949 = vmatprep.subr.bf16.mxu0 0
        %950 = vmatpush1.bf16.msra.mxu0 0
        %951 = vmatprep.subr.bf16.mxu0 0
        %952 = vmatpush1.bf16.msra.mxu0 0
        %953 = vmatprep.subr.bf16.mxu0 0
        %954 = vmatpush1.bf16.msra.mxu0 0
        %955 = vmatprep.subr.bf16.mxu0 0
        %956 = vmatpush1.bf16.msra.mxu0 0
        %957 = vmatprep.subr.bf16.mxu0 0
        %958 = vmatpush1.bf16.msra.mxu0 0
        %959 = vmatprep.subr.bf16.mxu0 0
        %960 = vmatpush1.bf16.msra.mxu0 0
        %961 = vmatprep.subr.bf16.mxu0 0
        %962 = vmatpush1.bf16.msra.mxu0 0
        %963 = vmatprep.subr.bf16.mxu0 0
        %964 = vmatpush1.bf16.msra.mxu0 0
        %965 = vmatprep.subr.bf16.mxu0 0
        %966 = vmatpush1.bf16.msra.mxu0 0
        %967 = vmatprep.mubr.bf16.mxu0 0
        %968 = vmatmul.mubr.bf16.gmra.mrb[0].mxu0 %v912
        %v969 = vpop.f32.mrb[0].mxu0
        %v970 = vadd.f32 %v885, %v969
        %v971 = vpop.f32.mrb[0].mxu0
        %v972 = vpop.f32.mrb[0].mxu0
        %v973 = vadd.f32 %v885, %v972
        %v974 = vpop.f32.mrb[0].mxu0
        %975 = vmatprep.mubr.bf16.mxu0 0
        %976 = vmatmul.mubr.bf16.gmra.mrb[0].mxu0 %v915
        %v977 = vpop.f32.mrb[0].mxu0
        %v978 = vadd.f32 %v885, %v977
        %v979 = vpop.f32.mrb[0].mxu0
        %v980 = vpop.f32.mrb[0].mxu0
        %v981 = vadd.f32 %v885, %v980
        %v982 = vpop.f32.mrb[0].mxu0
        %983 = vmatprep.mubr.bf16.mxu0 0
        %984 = vmatmul.mubr.bf16.gmra.mrb[0].mxu0 %v918
        %v985 = vpop.f32.mrb[0].mxu0
        %v986 = vadd.f32 %v885, %v985
        %v987 = vpop.f32.mrb[0].mxu0
        %v988 = vpop.f32.mrb[0].mxu0
        %v989 = vadd.f32 %v885, %v988
        %v990 = vpop.f32.mrb[0].mxu0
        %991 = vmatprep.mubr.bf16.mxu0 0
        %992 = vmatmul.mubr.bf16.gmra.mrb[0].mxu0 %v921
        %v993 = vpop.f32.mrb[0].mxu0
        %v994 = vadd.f32 %v885, %v993
        %v995 = vpop.f32.mrb[0].mxu0
        %v996 = vpop.f32.mrb[0].mxu0
        %v997 = vadd.f32 %v885, %v996
        %v998 = vpop.f32.mrb[0].mxu0
        %999 = vmatprep.mubr.bf16.mxu0 0
        %1000 = vmatmul.mubr.bf16.gmra.mrb[0].mxu0 %v924
        %v1001 = vpop.f32.mrb[0].mxu0
        %v1002 = vadd.f32 %v885, %v1001
        %v1003 = vpop.f32.mrb[0].mxu0
        %v1004 = vpop.f32.mrb[0].mxu0
        %v1005 = vadd.f32 %v885, %v1004
        %v1006 = vpop.f32.mrb[0].mxu0
        %1007 = vmatprep.mubr.bf16.mxu0 0
        %1008 = vmatmul.mubr.bf16.gmra.mrb[0].mxu0 %v927
        %v1009 = vpop.f32.mrb[0].mxu0
        %v1010 = vadd.f32 %v885, %v1009
        %v1011 = vpop.f32.mrb[0].mxu0
        %v1012 = vpop.f32.mrb[0].mxu0
        %v1013 = vadd.f32 %v885, %v1012
        %v1014 = vpop.f32.mrb[0].mxu0
        %1015 = vmatprep.mubr.bf16.mxu0 0
        %1016 = vmatmul.mubr.bf16.gmra.mrb[0].mxu0 %v930
        %v1017 = vpop.f32.mrb[0].mxu0
        %v1018 = vadd.f32 %v885, %v1017
        %v1019 = vpop.f32.mrb[0].mxu0
        %v1020 = vpop.f32.mrb[0].mxu0
        %v1021 = vadd.f32 %v885, %v1020
        %v1022 = vpop.f32.mrb[0].mxu0
        %1023 = vmatprep.mubr.bf16.mxu0 0
        %1024 = vmatmul.mubr.bf16.gmra.mrb[0].mxu0 %v933
        %v1025 = vpop.f32.mrb[0].mxu0
        %v1026 = vadd.f32 %v885, %v1025
        %v1027 = vpop.f32.mrb[0].mxu0
        %v1028 = vpop.f32.mrb[0].mxu0
        %v1029 = vadd.f32 %v885, %v1028
        %v1030 = vpop.f32.mrb[0].mxu0
        %1031 = vdwg.mxu0
        %v1032 = vmax.f32 %v970, 0.0
        %v1033 = vmax.f32 %v973, 0.0
        %v1034 = vmax.f32 %v978, 0.0
        %v1035 = vmax.f32 %v981, 0.0
        %v1036 = vmax.f32 %v986, 0.0
        %v1037 = vmax.f32 %v989, 0.0
        %v1038 = vmax.f32 %v994, 0.0
        %v1039 = vmax.f32 %v997, 0.0
        %v1040 = vmax.f32 %v1002, 0.0
        %v1041 = vmax.f32 %v1005, 0.0
        %v1042 = vmax.f32 %v1010, 0.0
        %v1043 = vmax.f32 %v1013, 0.0
        %v1044 = vmax.f32 %v1018, 0.0
        %v1045 = vmax.f32 %v1021, 0.0
        %v1046 = vmax.f32 %v1026, 0.0
        %v1047 = vmax.f32 %v1029, 0.0
        %v1048 = vpack.c.bf16 %v1033, %v1032
        %v1049 = vpack.c.bf16 %v1035, %v1034
        %v1050 = vpack.c.bf16 %v1037, %v1036
        %v1051 = vpack.c.bf16 %v1039, %v1038
        %v1052 = vpack.c.bf16 %v1041, %v1040
        %v1053 = vpack.c.bf16 %v1043, %v1042
        %v1054 = vpack.c.bf16 %v1045, %v1044
        %v1055 = vpack.c.bf16 %v1047, %v1046
        %v1057 = vlaneseq
        %v1058 = vshrl.u32 %v1057, 7
        %v1059 = vsub.s32 0, %v1058
        %v1060 = vrot.slane %v298, %v1059
        %v1070 = vunpack.c.l.b16 %v290
        %v1071 = vunpack.c.l.b16 %v291
        %v1072 = vunpack.c.l.b16 %v292
        %v1073 = vunpack.c.l.b16 %v293
        %v1074 = vunpack.c.l.b16 %v294
        %v1075 = vunpack.c.l.b16 %v295
        %v1076 = vunpack.c.l.b16 %v296
        %v1077 = vunpack.c.l.b16 %v297
        %v1078 = vpack.c.b16 %v1071, %v1070
        %v1079 = vpack.c.b16 %v1073, %v1072
        %v1080 = vpack.c.b16 %v1075, %v1074
        %v1081 = vpack.c.b16 %v1077, %v1076
        %v1087 = vsel %vm385, %v1048, 0
        %v1090 = vsel %vm385, %v1049, 0
        %v1093 = vsel %vm385, %v1050, 0
        %v1096 = vsel %vm385, %v1051, 0
        %v1099 = vsel %vm385, %v1052, 0
        %v1102 = vsel %vm385, %v1053, 0
        %v1105 = vsel %vm385, %v1054, 0
        %v1108 = vsel %vm385, %v1055, 0
        %1110 = vmatprep.subr.bf16.mxu0 0
        %1111 = vmatpush1.bf16.msra.mxu0 %v1078
        %1112 = vmatprep.subr.bf16.mxu0 0
        %1113 = vmatpush1.bf16.msra.mxu0 %v1079
        %1114 = vmatprep.subr.bf16.mxu0 0
        %1115 = vmatpush1.bf16.msra.mxu0 %v1080
        %1116 = vmatprep.subr.bf16.mxu0 0
        %1117 = vmatpush1.bf16.msra.mxu0 %v1081
        %1118 = vmatprep.subr.bf16.mxu0 0
        %1119 = vmatpush1.bf16.msra.mxu0 0
        %1120 = vmatprep.subr.bf16.mxu0 0
        %1121 = vmatpush1.bf16.msra.mxu0 0
        %1122 = vmatprep.subr.bf16.mxu0 0
        %1123 = vmatpush1.bf16.msra.mxu0 0
        %1124 = vmatprep.subr.bf16.mxu0 0
        %1125 = vmatpush1.bf16.msra.mxu0 0
        %1126 = vmatprep.subr.bf16.mxu0 0
        %1127 = vmatpush1.bf16.msra.mxu0 0
        %1128 = vmatprep.subr.bf16.mxu0 0
        %1129 = vmatpush1.bf16.msra.mxu0 0
        %1130 = vmatprep.subr.bf16.mxu0 0
        %1131 = vmatpush1.bf16.msra.mxu0 0
        %1132 = vmatprep.subr.bf16.mxu0 0
        %1133 = vmatpush1.bf16.msra.mxu0 0
        %1134 = vmatprep.subr.bf16.mxu0 0
        %1135 = vmatpush1.bf16.msra.mxu0 0
        %1136 = vmatprep.subr.bf16.mxu0 0
        %1137 = vmatpush1.bf16.msra.mxu0 0
        %1138 = vmatprep.subr.bf16.mxu0 0
        %1139 = vmatpush1.bf16.msra.mxu0 0
        %1140 = vmatprep.subr.bf16.mxu0 0
        %1141 = vmatpush1.bf16.msra.mxu0 0
        %1142 = vmatprep.mubr.bf16.mxu0 0
        %1143 = vmatmul.mubr.bf16.gmra.mrb[0].mxu0 %v1087
        %v1144 = vpop.f32.mrb[0].mxu0
        %v1145 = vadd.f32 %v1060, %v1144
        %v1146 = vpop.f32.mrb[0].mxu0
        %v1147 = vpop.f32.mrb[0].mxu0
        %v1148 = vadd.f32 %v1060, %v1147
        %v1149 = vpop.f32.mrb[0].mxu0
        %1150 = vmatprep.mubr.bf16.mxu0 0
        %1151 = vmatmul.mubr.bf16.gmra.mrb[0].mxu0 %v1090
        %v1152 = vpop.f32.mrb[0].mxu0
        %v1153 = vadd.f32 %v1060, %v1152
        %v1154 = vpop.f32.mrb[0].mxu0
        %v1155 = vpop.f32.mrb[0].mxu0
        %v1156 = vadd.f32 %v1060, %v1155
        %v1157 = vpop.f32.mrb[0].mxu0
        %1158 = vmatprep.mubr.bf16.mxu0 0
        %1159 = vmatmul.mubr.bf16.gmra.mrb[0].mxu0 %v1093
        %v1160 = vpop.f32.mrb[0].mxu0
        %v1161 = vadd.f32 %v1060, %v1160
        %v1162 = vpop.f32.mrb[0].mxu0
        %v1163 = vpop.f32.mrb[0].mxu0
        %v1164 = vadd.f32 %v1060, %v1163
        %v1165 = vpop.f32.mrb[0].mxu0
        %1166 = vmatprep.mubr.bf16.mxu0 0
        %1167 = vmatmul.mubr.bf16.gmra.mrb[0].mxu0 %v1096
        %v1168 = vpop.f32.mrb[0].mxu0
        %v1169 = vadd.f32 %v1060, %v1168
        %v1170 = vpop.f32.mrb[0].mxu0
        %v1171 = vpop.f32.mrb[0].mxu0
        %v1172 = vadd.f32 %v1060, %v1171
        %v1173 = vpop.f32.mrb[0].mxu0
        %1174 = vmatprep.mubr.bf16.mxu0 0
        %1175 = vmatmul.mubr.bf16.gmra.mrb[0].mxu0 %v1099
        %v1176 = vpop.f32.mrb[0].mxu0
        %v1177 = vadd.f32 %v1060, %v1176
        %v1178 = vpop.f32.mrb[0].mxu0
        %v1179 = vpop.f32.mrb[0].mxu0
        %v1180 = vadd.f32 %v1060, %v1179
        %v1181 = vpop.f32.mrb[0].mxu0
        %1182 = vmatprep.mubr.bf16.mxu0 0
        %1183 = vmatmul.mubr.bf16.gmra.mrb[0].mxu0 %v1102
        %v1184 = vpop.f32.mrb[0].mxu0
        %v1185 = vadd.f32 %v1060, %v1184
        %v1186 = vpop.f32.mrb[0].mxu0
        %v1187 = vpop.f32.mrb[0].mxu0
        %v1188 = vadd.f32 %v1060, %v1187
        %v1189 = vpop.f32.mrb[0].mxu0
        %1190 = vmatprep.mubr.bf16.mxu0 0
        %1191 = vmatmul.mubr.bf16.gmra.mrb[0].mxu0 %v1105
        %v1192 = vpop.f32.mrb[0].mxu0
        %v1193 = vadd.f32 %v1060, %v1192
        %v1194 = vpop.f32.mrb[0].mxu0
        %v1195 = vpop.f32.mrb[0].mxu0
        %v1196 = vadd.f32 %v1060, %v1195
        %v1197 = vpop.f32.mrb[0].mxu0
        %1198 = vmatprep.mubr.bf16.mxu0 0
        %1199 = vmatmul.mubr.bf16.gmra.mrb[0].mxu0 %v1108
        %v1200 = vpop.f32.mrb[0].mxu0
        %v1201 = vadd.f32 %v1060, %v1200
        %v1202 = vpop.f32.mrb[0].mxu0
        %v1203 = vpop.f32.mrb[0].mxu0
        %v1204 = vadd.f32 %v1060, %v1203
        %v1205 = vpop.f32.mrb[0].mxu0
        %1206 = vdwg.mxu0
        %1207 = vst [vmem:[%s245] sm:$0xff] %v1145
        %1208 = vst [vmem:[%s245 + $0x8] sm:$0xff] %v1148
        %1209 = vst [vmem:[%s245 + $0x10] sm:$0xff] %v1153
        %1210 = vst [vmem:[%s245 + $0x18] sm:$0xff] %v1156
        %1211 = vst [vmem:[%s245 + $0x20] sm:$0xff] %v1161
        %1212 = vst [vmem:[%s245 + $0x28] sm:$0xff] %v1164
        %1213 = vst [vmem:[%s245 + $0x30] sm:$0xff] %v1169
        %1214 = vst [vmem:[%s245 + $0x38] sm:$0xff] %v1172
        %1215 = vst [vmem:[%s245 + $0x40] sm:$0xff] %v1177
        %1216 = vst [vmem:[%s245 + $0x48] sm:$0xff] %v1180
        %1217 = vst [vmem:[%s245 + $0x50] sm:$0xff] %v1185
        %1218 = vst [vmem:[%s245 + $0x58] sm:$0xff] %v1188
        %1219 = vst [vmem:[%s245 + $0x60] sm:$0xff] %v1193
        %1220 = vst [vmem:[%s245 + $0x68] sm:$0xff] %v1196
        %1221 = vst [vmem:[%s245 + $0x70] sm:$0xff] %v1201
        %1222 = vst [vmem:[%s245 + $0x78] sm:$0xff] %v1204
        %s1223 = sand.u32 %s159, 1
        %s1224 = scalar_lea.sflag [#allocation3], %s1223
        %s1225 = sand.u32 %s159, 1
        %s1226 = smul.addr %s1225, 128
        %s1227 = scalar_lea.vmem [#allocation2], %s1226
        // Predicated region
        $region45: #{tpu_custom_call.1} parent=43 // pred_check
          %p1228 = pneg %p169
        $region46: #{tpu_custom_call.1} parent=43 // pred_check_branch
          %1230 = sbr.rel (%p1228) target = $region48
        $region47: #{tpu_custom_call.1} parent=43 // pred_region
          %s1231 = smul.u32 16, %s20
          %s1233 = ssub.s32 2048, 2048
          %1234 = vsyncadd %s1224, %s1233
          %s1235 = smul.addr %s1231, 128
          %s1236 = scalar_lea.hbm %s6, %s1235
          %s1237 = sshll.u32 %s1227, 4
          %s1238 = int_to_ptr.vmem [resolvable:$true] %s1237
          %1243 = dma.vmem_to_hbm [thread:$0]  %s1238, 2048, %s1236, %s1224, 128, 128, 8
        $region48: #{tpu_custom_call.1} parent=43 // pred_fallthru
          _
      $region44: #{tpu_custom_call.1} parent=5 // pred_fallthru
        _
      %p1244 = scmp.le.s32.totalorder 2, %s15
      // Predicated region
      $region49: #{tpu_custom_call.1} parent=5 // pred_check
        %p1245 = pneg %p1244
      $region50: #{tpu_custom_call.1} parent=5 // pred_check_branch
        %1247 = sbr.rel (%p1245) target = $region52
      $region51: #{tpu_custom_call.1} parent=5 // pred_region
        %s1248 = ssub.s32 %s15, 2
        // Predicated region
        $region53: #{tpu_custom_call.1} parent=51 // pred_check
          %p1249 = pneg %p175
        $region54: #{tpu_custom_call.1} parent=51 // pred_check_branch
          %1251 = sbr.rel (%p1249) target = $region56
        $region55: #{tpu_custom_call.1} parent=51 // pred_region
          %s1252 = sand.u32 %s160, 1
          %s1253 = scalar_lea.sflag [#allocation3], %s1252
          %s1254 = sand.u32 %s160, 1
          %s1255 = smul.addr %s1254, 128
          %s1256 = scalar_lea.vmem [#allocation2], %s1255
          %1257 = dma.done %s1253, 2048
        $region56: #{tpu_custom_call.1} parent=51 // pred_fallthru
          _
      $region52: #{tpu_custom_call.1} parent=5 // pred_fallthru
        _
    $region6: #{tpu_custom_call.1} parent=1 // loop_footer
      %s19 = sadd.s32 1, %s15
    $region7: #{tpu_custom_call.1} parent=1 // loop_footer_branch
      %14 = sbr.rel target = $region3
    $region8: #{tpu_custom_call.1} parent=1 // loop_exit
      _
    %1258 = vsyncpa [#allocation3], 1
    %s1259 = scalar_lea.sflag [#allocation3], 1
    %1260 = vsyncpa %s1259, 1

</llo_original>
